<compile_context>
chip_gen: v5e
topology: v5e:2x2
jax: 0.10.0
libtpu: 0.0.40
codegen_flags: <defaults>
</compile_context>

<pallas_src>
import functools
import time
from math import sqrt

import numpy as np
import jax
import jax.numpy as jnp
from jax.experimental import pallas as pl
from jax.experimental.pallas import tpu as pltpu


# ----------------------------------------------------------------------------
# In-kernel activation helpers (f32 math; one EUP tanh + a few VPU ops each).
# ----------------------------------------------------------------------------
_SQRT_2_OVER_PI = 0.7978845608028654


def _gelu(x):
    # tanh-approximate GELU (perf-review item): max |err| vs the exact
    # erf-GELU is ~3e-3, well inside the declared output tolerance.
    return 0.5 * x * (1.0 + jnp.tanh(_SQRT_2_OVER_PI * (x + 0.044715 * x * x * x)))


def _sigmoid(x):
    # sigmoid(x) = 0.5*(1 + tanh(x/2)): single EUP transcendental; the clip
    # guarantees the [0, 1] range claimed by the module's Sigmoid output.
    return jnp.clip(0.5 * (jnp.tanh(0.5 * x) + 1.0), 0.0, 1.0)


# ----------------------------------------------------------------------------
# Pallas conv kernel: stride-1 Conv2d + bias + activation, per-tap GEMMs.
# ----------------------------------------------------------------------------
def _conv_gemm_kernel(x_ref, w_ref, b_ref, o_ref, *scratch,
                      ks, pad, H, W, Wp, act):
    """One image per grid step.

    x_ref : (1, Cin, H*W)       flattened NCHW image (f32 or bf16)
    w_ref : (ks*ks, Cout, Cin)  bf16; tap t = ky*ks + kx is w_ref[t]
    b_ref : (Cout, 1)           f32
    o_ref : (1, Cout, L)        L = Ho*Wp rounded up to a 128 multiple for
                                ks>1 (lane-dense stores); wrapper trims.
    scratch (ks > 1 only):
      xpf_ref : (Cin, (ks-1)*(Wp+1) + L) bf16 halo-zero-padded flat image.

    out[:, y*Wp + x] = sum_t w_ref[t] @ xpf[:, ky*Wp + kx + y*Wp + x], so
    every MXU operand is a contiguous VMEM view — no im2col patches matrix
    is materialized and there are no in-kernel reshapes / transposes.
    """
    cin = x_ref.shape[1]
    L = o_ref.shape[2]

    if ks == 1:
        acc = jnp.dot(w_ref[0], x_ref[0].astype(jnp.bfloat16),
                      preferred_element_type=jnp.float32)
    else:
        (xpf_ref,) = scratch
        width = xpf_ref.shape[1]
        zdt = xpf_ref.dtype

        # ---- build the zero-padded flat image; zero ONLY the halo ----------
        # (interior rows are fully overwritten, so no whole-buffer zeroing).
        # TODO(synk): at real HNeRV H replace the static row unroll with a
        #   row-tiled grid + lax.fori_loop and DMA-built padding; at H<=32
        #   here static unrolling is cheapest and most robust to lower.
        if pad > 0:
            top = pad * Wp + pad                 # top halo + row-0 left pad
            xpf_ref[:, :top] = jnp.zeros((cin, top), zdt)
            for yy in range(H):
                dst = (yy + pad) * Wp + pad
                xpf_ref[:, dst:dst + W] = (
                    x_ref[0, :, yy * W:(yy + 1) * W].astype(zdt))
                # right pad of this row + left pad of next row / bottom halo.
                xpf_ref[:, dst + W:dst + W + 2 * pad] = (
                    jnp.zeros((cin, 2 * pad), zdt))
            tail = (H + pad) * Wp + pad
        else:
            xpf_ref[:, :H * W] = x_ref[0].astype(zdt)
            tail = H * W
        if tail < width:
            xpf_ref[:, tail:] = jnp.zeros((cin, width - tail), zdt)

        # ---- ks*ks tap GEMMs accumulated in f32 (no patches matrix) --------
        acc = None
        for ky in range(ks):
            for kx in range(ks):
                t = ky * ks + kx
                off = ky * Wp + kx
                part = jnp.dot(w_ref[t], xpf_ref[:, off:off + L],
                               preferred_element_type=jnp.float32)
                acc = part if acc is None else acc + part

    acc = acc + b_ref[...]                       # (Cout, 1) lane-broadcast
    if act == "gelu":
        acc = _gelu(acc)
    elif act == "sigmoid":
        acc = _sigmoid(acc)
    o_ref[0] = acc.astype(o_ref.dtype)


def conv2d_same_nchw(x, w3, b2, *, ks, act, out_dtype=jnp.bfloat16,
                     cout_real=None):
    """PyTorch Conv2d(stride=1, padding=(ks-1)//2, bias=True) + fused act.

    NCHW in / NCHW out, no layout transposes and no jnp.pad HBM round trips:
    the kernel consumes the free flattened (N, C, H*W) view and builds the
    'same' padding halo inside VMEM.  Intermediate layers emit bf16 (the next
    layer's MXU operands are bf16 anyway); the head emits f32.

    Padding note: the reference uses ceil((ks - 1) // 2); // already floors,
    so this equals (ks - 1) // 2 exactly (matches PyTorch bit-for-bit; even
    ks shrinks the output identically in both implementations).
    """
    N, Cin, H, W = x.shape
    KK, Cout, Cin_w = w3.shape
    assert KK == ks * ks and Cin_w == Cin, (w3.shape, ks, Cin)
    pad = (ks - 1) // 2
    Hp, Wp = H + 2 * pad, W + 2 * pad
    Ho, Wo = Hp - ks + 1, Wp - ks + 1
    L = Ho * Wp                                  # padded-pitch output length
    # Lane-dense output stores: round L up to a 128 multiple when a padded
    # scratch backs the extra (zero-fed) columns; trimmed for free below.
    Lk = ((L + 127) // 128) * 128 if ks > 1 else L

    scratch = []
    xpf_width = 0
    if ks > 1:
        xpf_width = (ks - 1) * (Wp + 1) + Lk
        scratch = [pltpu.VMEM((Cin, xpf_width), jnp.bfloat16)]

    out_itemsize = jnp.dtype(out_dtype).itemsize
    pad_traffic = 0 if ks == 1 else 2 * N * Cin * xpf_width * 2   # build+read
    cost = pl.CostEstimate(
        flops=int(2 * N * Cout * (ks * ks * Cin) * Lk),
        transcendentals=int(N * Cout * Lk),
        bytes_accessed=int(x.nbytes + N * Cout * Lk * out_itemsize
                           + w3.size * 2 + b2.size * 4 + pad_traffic))

    out = pl.pallas_call(
        functools.partial(_conv_gemm_kernel, ks=ks, pad=pad, H=H, W=W,
                          Wp=Wp, act=act),
        out_shape=jax.ShapeDtypeStruct((N, Cout, Lk), out_dtype),
        grid=(N,),
        in_specs=[
            pl.BlockSpec((1, Cin, H * W), lambda n: (n, 0, 0)),
            pl.BlockSpec((KK, Cout, Cin), lambda n: (0, 0, 0)),
            pl.BlockSpec((Cout, 1), lambda n: (0, 0)),
        ],
        out_specs=pl.BlockSpec((1, Cout, Lk), lambda n: (n, 0, 0)),
        scratch_shapes=scratch,
        # TODO(synk): at real resolutions add a second "parallel" row-tile
        #   grid axis (uses both v7x TensorCores) and set per-generation
        #   vmem_limit_bytes; not needed at these toy shapes.
        compiler_params=pltpu.CompilerParams(
            dimension_semantics=("parallel",)),
        cost_estimate=cost,
    )(x.reshape(N, Cin, H * W), w3, b2)

    # Trim the lane padding and the Wp-Wo don't-care columns (cheap slices
    # that XLA fuses into the consumer permute), then the free reshape.
    if Lk != L:
        out = out[:, :, :L]
    out = out.reshape(N, Cout, Ho, Wp)
    if Wo != Wp:
        out = out[:, :, :, :Wo]
    if cout_real is not None and cout_real != Cout:
        out = out[:, :cout_real]
    return out


def pixel_shuffle(x_nchw, r):
    """nn.PixelShuffle(r) on NCHW (pure permutation, kept as XLA glue)."""
    if r == 1:
        return x_nchw
    n, c, h, w = x_nchw.shape
    oc = c // (r * r)
    x = x_nchw.reshape(n, oc, r, r, h, w)
    x = jnp.transpose(x, (0, 1, 4, 2, 5, 3))
    return x.reshape(n, oc, h * r, w * r)


# ----------------------------------------------------------------------------
# HNeRV model (decoder path).
# ----------------------------------------------------------------------------
class HNeRVPallas:
    def __init__(self, ks, num_blks, enc_strds, enc_dim, dec_strds, fc_dim,
                 reduce, lower_width, key):
        ks_enc, ks_dec1, ks_dec2 = [int(x) for x in ks.split('_')]
        enc_blks, dec_blks = [int(x) for x in num_blks.split('_')]
        enc_dim1, enc_dim2 = [int(x) for x in enc_dim.split('_')]
        # TODO(synk): the ConvNeXt encoder class is not part of the provided
        # reference; forward() is exercised via `input_embed`, so only the
        # decoder (the HNeRV hot path) is implemented.
        hnerv_hw = int(np.prod(enc_strds) // np.prod(dec_strds))
        self.fc_h, self.fc_w = hnerv_hw, hnerv_hw
        ch_in = enc_dim2
        ngf = fc_dim
        out_f = int(ngf * self.fc_h * self.fc_w)

        layer_cfgs = []
        # decoder[0]: the reference builds Conv2d(..., kernel_size=0), which is
        # invalid in PyTorch; implemented as the intended per-pixel 1x1 FC.
        layer_cfgs.append(dict(cin=ch_in, cout=out_f, ks=1, strd=1))
        for i, strd in enumerate(dec_strds):
            reduction = sqrt(strd) if reduce == -1 else reduce
            new_ngf = int(max(round(ngf / reduction), lower_width))
            for j in range(dec_blks):
                kss = min(ks_dec1 + 2 * i, ks_dec2)
                s = 1 if j else strd
                layer_cfgs.append(dict(cin=ngf, cout=new_ngf * s * s, ks=kss, strd=s))
                ngf = new_ngf
        self.layer_cfgs = layer_cfgs
        self.head_ks = 3

        # Deterministic synthetic parameters (not a checkpoint load).  Raw f32
        # weights are kept for the pure-JAX reference check; kernel weights
        # are pre-packed ONCE into (ks*ks, Cout, Cin) bf16 (each tap a
        # contiguous block), with Cout padded to a multiple of 8.
        raw_params, params = [], []
        for cfg in layer_cfgs:
            key, kw, kb = jax.random.split(key, 3)
            w = 0.1 * jax.random.normal(kw, (cfg['cout'], cfg['cin'],
                                             cfg['ks'], cfg['ks']), jnp.float32)
            b = 0.05 * jax.random.normal(kb, (cfg['cout'],), jnp.float32)
            raw_params.append((w, b))
            params.append(self._pack(w, b))
        key, kw, kb = jax.random.split(key, 3)
        head_w = 0.1 * jax.random.normal(
            kw, (3, ngf, self.head_ks, self.head_ks), jnp.float32)
        head_b = 0.05 * jax.random.normal(kb, (3,), jnp.float32)
        self.raw_params, self.params = raw_params, params
        self.raw_head, self.head = (head_w, head_b), self._pack(head_w, head_b)

    @staticmethod
    def _pack(w_oihw, b, cout_multiple=8):
        # (Cout, Cin, ky, kx) -> (ky*kx, Cout, Cin): tap t = ky*ks + kx is a
        # contiguous (Cout, Cin) block (no lane-offset weight slicing in the
        # kernel).  Cout is padded to a multiple of 8 (sublane-dense stores /
        # MXU M dim); the wrapper slices the real channels back off.
        cout, cin, kh, kw_ = w_oihw.shape
        w3 = jnp.transpose(w_oihw, (2, 3, 0, 1)).reshape(kh * kw_, cout, cin)
        cout_pad = -(-cout // cout_multiple) * cout_multiple
        if cout_pad != cout:
            w3 = jnp.pad(w3, ((0, 0), (0, cout_pad - cout), (0, 0)))
            b = jnp.pad(b, (0, cout_pad - cout))
        return (w3.astype(jnp.bfloat16),
                b.reshape(cout_pad, 1).astype(jnp.float32), cout)

    def __call__(self, inp, input_embed=None):
        if input_embed is not None:
            img_embed = input_embed
        else:
            raise NotImplementedError("encoder (ConvNeXt) not provided; pass input_embed")
        embed_list = [img_embed]
        # NOTE: like the PyTorch reference this is host wall-clock around
        # lazily executed ops, not a reliable kernel timing (use xprof).
        dec_start = time.time()

        # decoder[0]: 1x1 conv + GELU, then the HNeRV fc_h/fc_w unfold
        # (a pure permutation, identical to the reference's view/permute).
        w0, b0, c0 = self.params[0]
        output = conv2d_same_nchw(img_embed, w0, b0,
                                  ks=self.layer_cfgs[0]['ks'], act="gelu",
                                  out_dtype=jnp.bfloat16, cout_real=c0)
        n, c, h, w_ = output.shape
        output = output.reshape(n, -1, self.fc_h, self.fc_w, h, w_)
        output = jnp.transpose(output, (0, 1, 4, 2, 5, 3))
        output = output.reshape(n, -1, self.fc_h * h, self.fc_w * w_)
        embed_list.append(output)

        # decoder[1:]: conv(+bias+GELU fused) then PixelShuffle.  GELU is
        # elementwise so applying it before the shuffle is mathematically
        # identical to the reference's conv -> shuffle -> GELU.
        for cfg, (wt, bs, cr) in zip(self.layer_cfgs[1:], self.params[1:]):
            output = conv2d_same_nchw(output, wt, bs, ks=cfg['ks'], act="gelu",
                                      out_dtype=jnp.bfloat16, cout_real=cr)
            output = pixel_shuffle(output, cfg['strd'])
            embed_list.append(output)

        hw3, hb2, hc = self.head
        img_out = conv2d_same_nchw(output, hw3, hb2, ks=self.head_ks,
                                   act="sigmoid", out_dtype=jnp.float32,
                                   cout_real=hc)
        img_out = jax.block_until_ready(img_out)   # stands in for cuda.synchronize()
        dec_time = time.time() - dec_start
        return img_out, embed_list, dec_time


# ----------------------------------------------------------------------------
# Pure-JAX (XLA, f32, exact GELU) reference of the same decoder (validation).
# ----------------------------------------------------------------------------
def _ref_conv(x, w, b, pad):
    out = jax.lax.conv_general_dilated(
        x, w, window_strides=(1, 1), padding=[(pad, pad), (pad, pad)],
        dimension_numbers=('NCHW', 'OIHW', 'NCHW'))
    return out + b.reshape(1, -1, 1, 1)


def reference_forward(model, img_embed):
    w0, b0 = model.raw_params[0]
    out = jax.nn.gelu(_ref_conv(img_embed, w0, b0, 0), approximate=False)
    n, c, h, w_ = out.shape
    out = out.reshape(n, -1, model.fc_h, model.fc_w, h, w_)
    out = jnp.transpose(out, (0, 1, 4, 2, 5, 3))
    out = out.reshape(n, -1, model.fc_h * h, model.fc_w * w_)
    for cfg, (wt, bs) in zip(model.layer_cfgs[1:], model.raw_params[1:]):
        pad = (cfg['ks'] - 1) // 2
        out = _ref_conv(out, wt, bs, pad)
        out = pixel_shuffle(out, cfg['strd'])
        out = jax.nn.gelu(out, approximate=False)
    hw, hb = model.raw_head
    return jax.nn.sigmoid(_ref_conv(out, hw, hb, (model.head_ks - 1) // 2))


if __name__ == "__main__":
    key = jax.random.PRNGKey(0)
    k_model, k_in, k_embed = jax.random.split(key, 3)

    # Small config: enc_strds prod=16, dec_strds prod=8 -> fc_h=fc_w=2.
    model = HNeRVPallas(ks='0_1_5', num_blks='1_1',
                        enc_strds=[4, 2, 2], enc_dim='16_8',
                        dec_strds=[4, 2], fc_dim=16,
                        reduce=2, lower_width=4, key=k_model)

    N = 2
    x = jax.random.normal(k_in, (N, 3, 32, 32), jnp.float32)   # raw frames (encoder unused)
    # encoder output shape: (N, enc_dim2, H/prod(enc_strds), W/prod(enc_strds))
    embed = jax.random.normal(k_embed, (N, 8, 2, 2), jnp.float32)

    img_out, embed_list, dec_time = model(x, input_embed=embed)
    img_out = jax.block_until_ready(img_out)
    jax.block_until_ready(embed_list)

    assert img_out.shape == (N, 3, 32, 32), img_out.shape
    assert img_out.dtype == jnp.float32
    assert bool(jnp.all(jnp.isfinite(img_out)))
    assert bool(jnp.all((img_out >= 0.0) & (img_out <= 1.0)))   # sigmoid range
    expected = [(N, 8, 2, 2), (N, 16, 4, 4), (N, 8, 16, 16), (N, 4, 32, 32)]
    assert [tuple(e.shape) for e in embed_list] == expected, [e.shape for e in embed_list]

    # Numerics vs a pure-JAX f32 exact-GELU reference.  The kernel uses bf16
    # MXU operands, bf16 intermediate activations, and tanh-approximate
    # GELU/sigmoid, so agreement is ~1e-3 level, not bit-exact; 3e-2 is a
    # generous documented tolerance.
    ref = jax.block_until_ready(reference_forward(model, embed))
    assert float(jnp.max(jnp.abs(img_out - ref))) < 3e-2

    print("KERNEL_OK")
</pallas_src>

<mosaic_0001>
module attributes {stable_mosaic.version = 11 : i64} {
  func.func @_conv_gemm_kernel(%arg0: i32, %arg1: memref<1x8x4xf32, #tpu.memory_space<vmem>>, %arg2: memref<1x64x8xbf16, #tpu.memory_space<vmem>>, %arg3: memref<64x1xf32, #tpu.memory_space<vmem>>, %arg4: memref<1x64x4xbf16, #tpu.memory_space<vmem>>) attributes {dimension_semantics = [#tpu.dimension_semantics<parallel>], iteration_bounds = array<i64: 2>, scalar_prefetch = 0 : i64, scratch_operands = 0 : i64, tpu.core_type = #tpu.core_type<tc>, window_params = [{transform_indices = @transform_0, window_bounds = array<i64: 1, 8, 4>}, {pipeline_mode = #tpu.pipeline_mode<synchronous>, transform_indices = @transform_1, window_bounds = array<i64: 1, 64, 8>}, {pipeline_mode = #tpu.pipeline_mode<synchronous>, transform_indices = @transform_2, window_bounds = array<i64: 64, 1>}, {transform_indices = @transform_3, window_bounds = array<i64: 1, 64, 4>}]} {
    %c0 = arith.constant 0 : index
    %c0_0 = arith.constant 0 : index
    %c0_1 = arith.constant 0 : index
    %0 = vector.load %arg2[%c0, %c0_0, %c0_1] : memref<1x64x8xbf16, #tpu.memory_space<vmem>>, vector<1x64x8xbf16>
    %1 = vector.shape_cast %0 : vector<1x64x8xbf16> to vector<64x8xbf16>
    %c0_2 = arith.constant 0 : index
    %c0_3 = arith.constant 0 : index
    %c0_4 = arith.constant 0 : index
    %2 = vector.load %arg1[%c0_2, %c0_3, %c0_4] : memref<1x8x4xf32, #tpu.memory_space<vmem>>, vector<1x8x4xf32>
    %3 = vector.shape_cast %2 : vector<1x8x4xf32> to vector<8x4xf32>
    %4 = arith.truncf %3 : vector<8x4xf32> to vector<8x4xbf16>
    %cst = arith.constant dense<0.000000e+00> : vector<64x4xf32>
    %5 = tpu.matmul %1, %4, %cst {dimension_numbers = #tpu.dot_dimension_numbers<[1], [0], [0], [1], [0, 0, 1, 1], [], []>} : vector<64x8xbf16>, vector<8x4xbf16>, vector<64x4xf32> -> vector<64x4xf32>
    %c0_5 = arith.constant 0 : index
    %c0_6 = arith.constant 0 : index
    %6 = vector.load %arg3[%c0_5, %c0_6] : memref<64x1xf32, #tpu.memory_space<vmem>>, vector<64x1xf32>
    %7 = vector.broadcast %6 : vector<64x1xf32> to vector<64x4xf32>
    %8 = arith.addf %5, %7 : vector<64x4xf32>
    %cst_7 = arith.constant 5.000000e-01 : f32
    %9 = vector.broadcast %cst_7 : f32 to vector<64x4xf32>
    %10 = arith.mulf %9, %8 : vector<64x4xf32>
    %cst_8 = arith.constant 4.471500e-02 : f32
    %11 = vector.broadcast %cst_8 : f32 to vector<64x4xf32>
    %12 = arith.mulf %11, %8 : vector<64x4xf32>
    %13 = arith.mulf %12, %8 : vector<64x4xf32>
    %14 = arith.mulf %13, %8 : vector<64x4xf32>
    %15 = arith.addf %8, %14 : vector<64x4xf32>
    %cst_9 = arith.constant 0.797884583 : f32
    %16 = vector.broadcast %cst_9 : f32 to vector<64x4xf32>
    %17 = arith.mulf %16, %15 : vector<64x4xf32>
    %18 = math.tanh %17 : vector<64x4xf32>
    %cst_10 = arith.constant 1.000000e+00 : f32
    %19 = vector.broadcast %cst_10 : f32 to vector<64x4xf32>
    %20 = arith.addf %19, %18 : vector<64x4xf32>
    %21 = arith.mulf %10, %20 : vector<64x4xf32>
    %22 = arith.truncf %21 : vector<64x4xf32> to vector<64x4xbf16>
    %c0_11 = arith.constant 0 : index
    %c0_12 = arith.constant 0 : index
    %c0_13 = arith.constant 0 : index
    %23 = vector.load %arg4[%c0_11, %c0_12, %c0_13] : memref<1x64x4xbf16, #tpu.memory_space<vmem>>, vector<1x64x4xbf16>
    %24 = vector.shape_cast %23 : vector<1x64x4xbf16> to vector<64x4xbf16>
    %25 = vector.shape_cast %22 : vector<64x4xbf16> to vector<1x64x4xbf16>
    tpu.vector_store %arg4[%c0_11, %c0_12, %c0_13], %25 {strides = array<i32>} : memref<1x64x4xbf16, #tpu.memory_space<vmem>>, vector<1x64x4xbf16>,
    return
  }
  func.func @transform_0(%arg0: i32) -> (i32, i32, i32) {
    %c0_i32 = arith.constant 0 : i32
    %c0_i32_0 = arith.constant 0 : i32
    %c0_i32_1 = arith.constant 0 : i32
    return %arg0, %c0_i32, %c0_i32_0 : i32, i32, i32
  }
  func.func @transform_1(%arg0: i32) -> (i32, i32, i32) {
    %c0_i32 = arith.constant 0 : i32
    %c0_i32_0 = arith.constant 0 : i32
    %c0_i32_1 = arith.constant 0 : i32
    %c0_i32_2 = arith.constant 0 : i32
    return %c0_i32, %c0_i32_0, %c0_i32_1 : i32, i32, i32
  }
  func.func @transform_2(%arg0: i32) -> (i32, i32) {
    %c0_i32 = arith.constant 0 : i32
    %c0_i32_0 = arith.constant 0 : i32
    %c0_i32_1 = arith.constant 0 : i32
    return %c0_i32, %c0_i32_0 : i32, i32
  }
  func.func @transform_3(%arg0: i32) -> (i32, i32, i32) {
    %c0_i32 = arith.constant 0 : i32
    %c0_i32_0 = arith.constant 0 : i32
    %c0_i32_1 = arith.constant 0 : i32
    return %arg0, %c0_i32, %c0_i32_0 : i32, i32, i32
  }
}

</mosaic_0001>

<llo_original>
// kernel: tpu_custom_call.1
$region0: #{tpu_custom_call.1}
  #allocation0 [shape = 'u32[]', space=smem, size = 0x4, offset = 0x4, fixed_abs, tag = 'smem constant byte address 0x4 - core index']
  #allocation1 [shape = 'u32[72,128]{1,0:T(1,128)}', space=vmem, size = 0x9000, scoped, tag = 'internal scratch']
  %s0 = inlined_call_operand.vmem [shape: f32[2,8,4], index: 0, kind: input, shape index: {}]
  %s1 = inlined_call_operand.vmem [shape: bf16[1,64,8], index: 1, kind: input, shape index: {}]
  %s2 = inlined_call_operand.vmem [shape: f32[64,1], index: 2, kind: input, shape index: {}]
  %s3 = inlined_call_operand.vmem [shape: bf16[2,64,4], index: 3, kind: output, shape index: {}]
  %s4 = sld [smem:[#allocation0]]
  $region45: #{tpu_custom_call.1} parent=0
    _
  %s6 = ssub.s32 1, %s4
  %s7 = scalar_select 0, %s6, %s4
  loop: start=0, step=1, limit=4
  $region2: #{tpu_custom_call.1} parent=0 // loop_pre_header
    _
  $region3: #{tpu_custom_call.1} parent=0 // loop_header
    %s9 = sphi 0, %s13
    %p10 = scmp.ge.s32.totalorder %s9, 4
    %s19 = sphi 0, %s21
    %s22 = sphi 0, %s19
    %s23 = sphi 0, %s22
    %s39 = sphi 0, %s23
    %s43 = sphi 0, %s43
    %s45 = sphi 0, %s43
    %s46 = sphi 0, %s45
    %s60 = sphi 0, %s46
    %s64 = sphi 0, %s64
    %s66 = sphi 0, %s64
    %s67 = sphi 0, %s66
    %s81 = sphi 0, %s67
    %s87 = sphi 0, %s89
    %s90 = sphi 0, %s87
    %s91 = sphi 0, %s90
    %s107 = sphi 0, %s91
  $region4: #{tpu_custom_call.1} parent=0 // loop_header_branch
    %12 = sbr.rel (%p10) target = $region8
  $region5: #{tpu_custom_call.1} parent=0 // loop_body
    %s14 = ssub.s32 %s9, 1
    %s15 = ssub.s32 %s9, 2
    %s16 = sadd.s32 %s9, 1
    %s17 = ssub.s32 %s9, %s16
    %p18 = scmp.eq.s32.totalorder %s17, 0
    %s20 = sadd.s32 %s19, 1
    %s21 = scalar_select %p18, %s19, %s20
    %p24 = pneg %p18
    %p25 = scmp.eq.s32.totalorder %s9, 1
    %p26 = por %p24, %p25
    %p27 = scmp.ne.s32.totalorder %s19, %s22
    %p28 = scmp.eq.s32.totalorder %s9, 0
    %p29 = por %p27, %p28
    %p30 = scmp.ne.s32.totalorder %s19, %s22
    %p31 = scmp.eq.s32.totalorder %s14, 1
    %p32 = por %p30, %p31
    %p33 = scmp.ne.s32.totalorder %s22, %s23
    %p34 = scmp.eq.s32.totalorder %s14, 0
    %p35 = por %p33, %p34
    %p36 = scmp.ne.s32.totalorder %s22, %s23
    %p37 = scmp.eq.s32.totalorder %s15, 1
    %p38 = por %p36, %p37
    %p40 = scmp.ne.s32.totalorder %s23, %s39
    %p41 = scmp.eq.s32.totalorder %s15, 0
    %p42 = por %p40, %p41
    %s44 = sadd.s32 %s43, 1
    %p47 = scmp.eq.s32.totalorder %s9, 1
    %p48 = scmp.ne.s32.totalorder %s43, %s45
    %p49 = scmp.eq.s32.totalorder %s9, 0
    %p50 = por %p48, %p49
    %p51 = scmp.ne.s32.totalorder %s43, %s45
    %p52 = scmp.eq.s32.totalorder %s14, 1
    %p53 = por %p51, %p52
    %p54 = scmp.ne.s32.totalorder %s45, %s46
    %p55 = scmp.eq.s32.totalorder %s14, 0
    %p56 = por %p54, %p55
    %p57 = scmp.ne.s32.totalorder %s45, %s46
    %p58 = scmp.eq.s32.totalorder %s15, 1
    %p59 = por %p57, %p58
    %p61 = scmp.ne.s32.totalorder %s46, %s60
    %p62 = scmp.eq.s32.totalorder %s15, 0
    %p63 = por %p61, %p62
    %s65 = sadd.s32 %s64, 1
    %p68 = scmp.eq.s32.totalorder %s9, 1
    %p69 = scmp.ne.s32.totalorder %s64, %s66
    %p70 = scmp.eq.s32.totalorder %s9, 0
    %p71 = por %p69, %p70
    %p72 = scmp.ne.s32.totalorder %s64, %s66
    %p73 = scmp.eq.s32.totalorder %s14, 1
    %p74 = por %p72, %p73
    %p75 = scmp.ne.s32.totalorder %s66, %s67
    %p76 = scmp.eq.s32.totalorder %s14, 0
    %p77 = por %p75, %p76
    %p78 = scmp.ne.s32.totalorder %s66, %s67
    %p79 = scmp.eq.s32.totalorder %s15, 1
    %p80 = por %p78, %p79
    %p82 = scmp.ne.s32.totalorder %s67, %s81
    %p83 = scmp.eq.s32.totalorder %s15, 0
    %p84 = por %p82, %p83
    %s85 = ssub.s32 %s9, %s16
    %p86 = scmp.eq.s32.totalorder %s85, 0
    %s88 = sadd.s32 %s87, 1
    %s89 = scalar_select %p86, %s87, %s88
    %p92 = pneg %p86
    %p93 = scmp.eq.s32.totalorder %s9, 1
    %p94 = por %p92, %p93
    %p95 = scmp.ne.s32.totalorder %s87, %s90
    %p96 = scmp.eq.s32.totalorder %s9, 0
    %p97 = por %p95, %p96
    %p98 = scmp.ne.s32.totalorder %s87, %s90
    %p99 = scmp.eq.s32.totalorder %s14, 1
    %p100 = por %p98, %p99
    %p101 = scmp.ne.s32.totalorder %s90, %s91
    %p102 = scmp.eq.s32.totalorder %s14, 0
    %p103 = por %p101, %p102
    %p104 = scmp.ne.s32.totalorder %s90, %s91
    %p105 = scmp.eq.s32.totalorder %s15, 1
    %p106 = por %p104, %p105
    %p108 = scmp.ne.s32.totalorder %s91, %s107
    %p109 = scmp.eq.s32.totalorder %s15, 0
    %p110 = por %p108, %p109
    %p111 = scmp.le.s32.totalorder 1, %s9
    %p112 = scmp.lt.s32.totalorder %s9, 3
    %p113 = pnand %p111, %p112
    %p114 = pneg %p113
    // Predicated region
    $region9: #{tpu_custom_call.1} parent=5 // pred_check
      _
    $region10: #{tpu_custom_call.1} parent=5 // pred_check_branch
      %116 = sbr.rel (%p113) target = $region12
    $region11: #{tpu_custom_call.1} parent=5 // pred_region
      %s117 = ssub.s32 %s9, 1
      // Predicated region
      $region13: #{tpu_custom_call.1} parent=11 // pred_check
        %p118 = pneg %p56
      $region14: #{tpu_custom_call.1} parent=11 // pred_check_branch
        %120 = sbr.rel (%p118) target = $region16
      $region15: #{tpu_custom_call.1} parent=11 // pred_region
        _
      $region16: #{tpu_custom_call.1} parent=11 // pred_fallthru
        _
      // Predicated region
      $region17: #{tpu_custom_call.1} parent=11 // pred_check
        %p121 = pneg %p77
      $region18: #{tpu_custom_call.1} parent=11 // pred_check_branch
        %123 = sbr.rel (%p121) target = $region20
      $region19: #{tpu_custom_call.1} parent=11 // pred_region
        _
      $region20: #{tpu_custom_call.1} parent=11 // pred_fallthru
        _
    $region12: #{tpu_custom_call.1} parent=5 // pred_fallthru
      _
    %p124 = scmp.lt.s32.totalorder %s9, 2
    // Predicated region
    $region21: #{tpu_custom_call.1} parent=5 // pred_check
      %p125 = pneg %p124
    $region22: #{tpu_custom_call.1} parent=5 // pred_check_branch
      %127 = sbr.rel (%p125) target = $region24
    $region23: #{tpu_custom_call.1} parent=5 // pred_region
      // Predicated region
      $region25: #{tpu_custom_call.1} parent=23 // pred_check
        %p128 = pneg %p29
      $region26: #{tpu_custom_call.1} parent=23 // pred_check_branch
        %130 = sbr.rel (%p128) target = $region28
      $region27: #{tpu_custom_call.1} parent=23 // pred_region
        %p131 = scmp.lt.s32.totalorder %s9, 1
        %s132 = scalar_select %p131, %s9, 1
        %s133 = smul.addr %s132, 8
        %s134 = scalar_lea.vmem %s0, %s133
      $region28: #{tpu_custom_call.1} parent=23 // pred_fallthru
        _
    $region24: #{tpu_custom_call.1} parent=5 // pred_fallthru
      _
    %p135 = scmp.le.s32.totalorder 1, %s9
    %p136 = scmp.lt.s32.totalorder %s9, 3
    %p137 = pnand %p135, %p136
    %p138 = pneg %p137
    // Predicated region
    $region29: #{tpu_custom_call.1} parent=5 // pred_check
      _
    $region30: #{tpu_custom_call.1} parent=5 // pred_check_branch
      %140 = sbr.rel (%p137) target = $region32
    $region31: #{tpu_custom_call.1} parent=5 // pred_region
      %s141 = ssub.s32 %s9, 1
      %p142 = scmp.lt.s32.totalorder %s14, 1
      %s143 = scalar_select %p142, %s14, 1
      %s144 = smul.addr %s143, 8
      %s145 = scalar_lea.vmem %s0, %s144
      %p146 = pneg %p35
      %p147 = pneg %p32
      %p148 = pneg %p56
      %p149 = pneg %p53
      %p150 = pneg %p77
      %p151 = pneg %p74
      %p152 = pneg %p103
      %p153 = pneg %p100
      %p154 = scmp.lt.s32.totalorder %s14, 1
      %s155 = scalar_select %p154, %s14, 1
      %s156 = smul.addr %s155, 8
      %s157 = smul.addr %s156, 4
      %s158 = scalar_lea.vmem %s3, %s157
      %p159 = scmp.lt.s32.totalorder %s14, 1
      %s160 = scalar_select %p159, %s14, 1
      %s161 = smul.addr %s160, 8
      %s162 = scalar_lea.vmem %s0, %s161
      %p163 = scmp.lt.s32.totalorder %s14, 1
      %s164 = scalar_select %p163, %s14, 1
      %s165 = smul.addr %s164, 8
      %s166 = smul.addr %s165, 4
      %s167 = scalar_lea.vmem %s3, %s166
      %v169 = vld [vmem:[%s1] sm:$0xf]
      %v170 = vld [vmem:[%s1 + $0x4] sm:$0xf]
      %v171 = vld [vmem:[%s1 + $0x8] sm:$0xf]
      %v172 = vld [vmem:[%s1 + $0xc] sm:$0xf]
      %v173 = vld [vmem:[%s1 + $0x10] sm:$0xf]
      %v174 = vld [vmem:[%s1 + $0x14] sm:$0xf]
      %v175 = vld [vmem:[%s1 + $0x18] sm:$0xf]
      %v176 = vld [vmem:[%s1 + $0x1c] sm:$0xf]
      %v177 = vld [vmem:[%s162] sm:$0xff]
      %v178 = vpack.c.bf16 %v177, %v177
      %v179 = vld [vmem:[%s2] sm:$0xff]
      %v180 = vld [vmem:[%s2 + $0x8] sm:$0xff]
      %v181 = vld [vmem:[%s2 + $0x10] sm:$0xff]
      %v182 = vld [vmem:[%s2 + $0x18] sm:$0xff]
      %v183 = vld [vmem:[%s2 + $0x20] sm:$0xff]
      %v184 = vld [vmem:[%s2 + $0x28] sm:$0xff]
      %v185 = vld [vmem:[%s2 + $0x30] sm:$0xff]
      %v186 = vld [vmem:[%s2 + $0x38] sm:$0xff]
      %188 = vset.pattern.permute.xlu0 0
      %189 = vperm.xlu0 %188, %v179
      %v190 = vpop.permute.xlu0 %189
      %193 = vset.pattern.permute.xlu0 0
      %194 = vperm.xlu0 %193, %v180
      %v195 = vpop.permute.xlu0 %194
      %198 = vset.pattern.permute.xlu0 0
      %199 = vperm.xlu0 %198, %v181
      %v200 = vpop.permute.xlu0 %199
      %203 = vset.pattern.permute.xlu0 0
      %204 = vperm.xlu0 %203, %v182
      %v205 = vpop.permute.xlu0 %204
      %208 = vset.pattern.permute.xlu0 0
      %209 = vperm.xlu0 %208, %v183
      %v210 = vpop.permute.xlu0 %209
      %213 = vset.pattern.permute.xlu0 0
      %214 = vperm.xlu0 %213, %v184
      %v215 = vpop.permute.xlu0 %214
      %218 = vset.pattern.permute.xlu0 0
      %219 = vperm.xlu0 %218, %v185
      %v220 = vpop.permute.xlu0 %219
      %223 = vset.pattern.permute.xlu0 0
      %224 = vperm.xlu0 %223, %v186
      %v225 = vpop.permute.xlu0 %224
      %v235 = vunpack.c.l.b16 %v169
      %v236 = vunpack.c.l.b16 %v170
      %v237 = vunpack.c.l.b16 %v171
      %v238 = vunpack.c.l.b16 %v172
      %v239 = vunpack.c.l.b16 %v173
      %v240 = vunpack.c.l.b16 %v174
      %v241 = vunpack.c.l.b16 %v175
      %v242 = vunpack.c.l.b16 %v176
      %v243 = vpack.c.b16 %v236, %v235
      %v244 = vpack.c.b16 %v238, %v237
      %v245 = vpack.c.b16 %v240, %v239
      %v246 = vpack.c.b16 %v242, %v241
      %vm247 = vcmask 64512
      %v249 = vsel %vm247, %v243, 0
      %v252 = vsel %vm247, %v244, 0
      %v255 = vsel %vm247, %v245, 0
      %v258 = vsel %vm247, %v246, 0
      %vm260 = vcmask 1043456
      %v262 = vsel %vm260, %v178, 0
      %264 = vmatpush.bf16.msra.mxu0 0
      %265 = vmatpush.bf16.msra.mxu0 0
      %266 = vmatpush.bf16.msra.mxu0 0
      %267 = vmatpush.bf16.msra.mxu0 0
      %268 = vmatpush.bf16.msra.mxu0 0
      %269 = vmatpush.bf16.msra.mxu0 0
      %270 = vmatpush.bf16.msra.mxu0 0
      %271 = vmatpush.bf16.msra.mxu0 %v262
      %272 = vmatmul.bf16.gmra.mxu0 %v249
      %v273 = vpop.f32.mrf.mxu0
      %v274 = vadd.f32 %v190, %v273
      %v275 = vpop.f32.mrf.mxu0
      %v276 = vadd.f32 %v195, %v275
      %277 = vmatmul.bf16.gmra.mxu0 %v252
      %v278 = vpop.f32.mrf.mxu0
      %v279 = vadd.f32 %v200, %v278
      %v280 = vpop.f32.mrf.mxu0
      %v281 = vadd.f32 %v205, %v280
      %282 = vmatmul.bf16.gmra.mxu0 %v255
      %v283 = vpop.f32.mrf.mxu0
      %v284 = vadd.f32 %v210, %v283
      %v285 = vpop.f32.mrf.mxu0
      %v286 = vadd.f32 %v215, %v285
      %287 = vmatmul.bf16.gmra.mxu0 %v258
      %v288 = vpop.f32.mrf.mxu0
      %v289 = vadd.f32 %v220, %v288
      %v290 = vpop.f32.mrf.mxu0
      %v291 = vadd.f32 %v225, %v290
      %292 = vdwg.mxu0
      %v293 = vmul.f32 %v274, 0.5
      %v294 = vmul.f32 %v276, 0.5
      %v295 = vmul.f32 %v279, 0.5
      %v296 = vmul.f32 %v281, 0.5
      %v297 = vmul.f32 %v284, 0.5
      %v298 = vmul.f32 %v286, 0.5
      %v299 = vmul.f32 %v289, 0.5
      %v300 = vmul.f32 %v291, 0.5
      %v301 = vmul.f32 %v274, 0.044715
      %v302 = vmul.f32 %v276, 0.044715
      %v303 = vmul.f32 %v279, 0.044715
      %v304 = vmul.f32 %v281, 0.044715
      %v305 = vmul.f32 %v284, 0.044715
      %v306 = vmul.f32 %v286, 0.044715
      %v307 = vmul.f32 %v289, 0.044715
      %v308 = vmul.f32 %v291, 0.044715
      %v309 = vmul.f32 %v301, %v274
      %v310 = vmul.f32 %v302, %v276
      %v311 = vmul.f32 %v303, %v279
      %v312 = vmul.f32 %v304, %v281
      %v313 = vmul.f32 %v305, %v284
      %v314 = vmul.f32 %v306, %v286
      %v315 = vmul.f32 %v307, %v289
      %v316 = vmul.f32 %v308, %v291
      %v317 = vmul.f32 %v309, %v274
      %v318 = vmul.f32 %v310, %v276
      %v319 = vmul.f32 %v311, %v279
      %v320 = vmul.f32 %v312, %v281
      %v321 = vmul.f32 %v313, %v284
      %v322 = vmul.f32 %v314, %v286
      %v323 = vmul.f32 %v315, %v289
      %v324 = vmul.f32 %v316, %v291
      %v325 = vadd.f32 %v274, %v317
      %v326 = vadd.f32 %v276, %v318
      %v327 = vadd.f32 %v279, %v319
      %v328 = vadd.f32 %v281, %v320
      %v329 = vadd.f32 %v284, %v321
      %v330 = vadd.f32 %v286, %v322
      %v331 = vadd.f32 %v289, %v323
      %v332 = vadd.f32 %v291, %v324
      %v333 = vmul.f32 %v325, 0.7978846
      %v334 = vmul.f32 %v326, 0.7978846
      %v335 = vmul.f32 %v327, 0.7978846
      %v336 = vmul.f32 %v328, 0.7978846
      %v337 = vmul.f32 %v329, 0.7978846
      %v338 = vmul.f32 %v330, 0.7978846
      %v339 = vmul.f32 %v331, 0.7978846
      %v340 = vmul.f32 %v332, 0.7978846
      %v341 = vtanh.pop %v333
      %v342 = vtanh.pop %v334
      %v343 = vtanh.pop %v335
      %v344 = vtanh.pop %v336
      %v345 = vtanh.pop %v337
      %v346 = vtanh.pop %v338
      %v347 = vtanh.pop %v339
      %v348 = vtanh.pop %v340
      %v349 = vadd.f32 %v341, 1.0
      %v350 = vadd.f32 %v342, 1.0
      %v351 = vadd.f32 %v343, 1.0
      %v352 = vadd.f32 %v344, 1.0
      %v353 = vadd.f32 %v345, 1.0
      %v354 = vadd.f32 %v346, 1.0
      %v355 = vadd.f32 %v347, 1.0
      %v356 = vadd.f32 %v348, 1.0
      %v357 = vmul.f32 %v293, %v349
      %v358 = vmul.f32 %v294, %v350
      %v359 = vmul.f32 %v295, %v351
      %v360 = vmul.f32 %v296, %v352
      %v361 = vmul.f32 %v297, %v353
      %v362 = vmul.f32 %v298, %v354
      %v363 = vmul.f32 %v299, %v355
      %v364 = vmul.f32 %v300, %v356
      %v365 = vpack.c.bf16 %v357, %v357
      %v366 = vpack.c.bf16 %v358, %v358
      %v367 = vpack.c.bf16 %v359, %v359
      %v368 = vpack.c.bf16 %v360, %v360
      %v369 = vpack.c.bf16 %v361, %v361
      %v370 = vpack.c.bf16 %v362, %v362
      %v371 = vpack.c.bf16 %v363, %v363
      %v372 = vpack.c.bf16 %v364, %v364
      %vm373 = vcmask 27648
      %374 = vst.msk [vmem:[%s167] sm:$0xf] %vm373, %v365
      %375 = vst.msk [vmem:[%s167 + $0x4] sm:$0xf] %vm373, %v366
      %376 = vst.msk [vmem:[%s167 + $0x8] sm:$0xf] %vm373, %v367
      %377 = vst.msk [vmem:[%s167 + $0xc] sm:$0xf] %vm373, %v368
      %378 = vst.msk [vmem:[%s167 + $0x10] sm:$0xf] %vm373, %v369
      %379 = vst.msk [vmem:[%s167 + $0x14] sm:$0xf] %vm373, %v370
      %380 = vst.msk [vmem:[%s167 + $0x18] sm:$0xf] %vm373, %v371
      %381 = vst.msk [vmem:[%s167 + $0x1c] sm:$0xf] %vm373, %v372
      %p382 = scmp.lt.s32.totalorder %s14, 1
      %s383 = scalar_select %p382, %s14, 1
      %s384 = smul.addr %s383, 8
      %s385 = smul.addr %s384, 4
      %s386 = scalar_lea.vmem %s3, %s385
      // Predicated region
      $region33: #{tpu_custom_call.1} parent=31 // pred_check
        %p387 = pneg %p100
      $region34: #{tpu_custom_call.1} parent=31 // pred_check_branch
        %389 = sbr.rel (%p387) target = $region36
      $region35: #{tpu_custom_call.1} parent=31 // pred_region
        _
      $region36: #{tpu_custom_call.1} parent=31 // pred_fallthru
        _
    $region32: #{tpu_custom_call.1} parent=5 // pred_fallthru
      _
    %p390 = scmp.le.s32.totalorder 2, %s9
    // Predicated region
    $region37: #{tpu_custom_call.1} parent=5 // pred_check
      %p391 = pneg %p390
    $region38: #{tpu_custom_call.1} parent=5 // pred_check_branch
      %393 = sbr.rel (%p391) target = $region40
    $region39: #{tpu_custom_call.1} parent=5 // pred_region
      %s394 = ssub.s32 %s9, 2
      // Predicated region
      $region41: #{tpu_custom_call.1} parent=39 // pred_check
        %p395 = pneg %p106
      $region42: #{tpu_custom_call.1} parent=39 // pred_check_branch
        %397 = sbr.rel (%p395) target = $region44
      $region43: #{tpu_custom_call.1} parent=39 // pred_region
        %p398 = scmp.lt.s32.totalorder %s15, 1
        %s399 = scalar_select %p398, %s15, 1
        %s400 = smul.addr %s399, 8
        %s401 = smul.addr %s400, 4
        %s402 = scalar_lea.vmem %s3, %s401
      $region44: #{tpu_custom_call.1} parent=39 // pred_fallthru
        _
    $region40: #{tpu_custom_call.1} parent=5 // pred_fallthru
      _
  $region6: #{tpu_custom_call.1} parent=0 // loop_footer
    %s13 = sadd.s32 1, %s9
  $region7: #{tpu_custom_call.1} parent=0 // loop_footer_branch
    %8 = sbr.rel target = $region3
  $region8: #{tpu_custom_call.1} parent=0 // loop_exit
    _

</llo_original>
